<compile_context>
chip_gen: v7x
topology: tpu7x:2x2x1
jax: 0.10.0
libtpu: 0.0.40
codegen_flags: <defaults>
</compile_context>

<pallas_src>
import math
import functools

import jax
import jax.numpy as jnp
from jax.experimental import pallas as pl
from jax.experimental.pallas import tpu as pltpu

EXPANSION = 2
INPLANES = 8
NUM_FEATS = 8
NUM_STACKS = 2
NUM_BLOCKS = 1
NUM_CLASSES = 4
HG_DEPTH = 4
BN_EPS = 1e-5

_PAD = 128  # lane padding inside the ghost-kernel scratch (>= W + 1 always)


# ----------------------------------------------------------------------------
# Pallas kernels
# ----------------------------------------------------------------------------
def _pw_kernel(*refs, pre, relu, add_res):
    """Fused 1x1 conv in channel-first layout.

    y = [relu]( (wT @ [relu(x*pre_s+pre_t)]) * s + t  [+ res] )
    refs: x(Cin,TM), wT(Cout,Cin), s(Cout,1), t(Cout,1),
          [pre_s(Cin,1), pre_t(Cin,1)], [res(Cout,TM)], out(Cout,TM)
    """
    o_ref = refs[-1]
    x_ref, wT_ref, s_ref, t_ref = refs[0:4]
    idx = 4
    x = x_ref[...]
    if pre:
        x = jnp.maximum(x * refs[idx][...] + refs[idx + 1][...], 0.0)
        idx += 2
    y = jnp.dot(wT_ref[...], x, preferred_element_type=jnp.float32)
    y = y * s_ref[...] + t_ref[...]
    if add_res:
        y = y + refs[idx][...]
        idx += 1
    if relu:
        y = jnp.maximum(y, 0.0)
    o_ref[...] = y


def _ghost_kernel(x_ref, wpT_ref, ps_ref, pt_ref, dw_ref, ds_ref, dt_ref,
                  o_ref, xpad_ref, *, N, H, W):
    """Fused GhostModule:
         x1 = relu(BN(wpT @ x))                 (primary 1x1 conv)
         x2 = relu(BN(depthwise3x3(x1)))        (cheap op, padding=1)
         out = concat([x1, x2], channel axis)   (written as (2, init_c, M))
    Depthwise runs on the flattened spatial axis: each tap is a shifted read
    from a lane-padded VMEM scratch, with boundary masks (no host padding).
    """
    init_c = wpT_ref.shape[0]
    M = N * H * W

    x1 = jnp.dot(wpT_ref[...], x_ref[...], preferred_element_type=jnp.float32)
    x1 = jnp.maximum(x1 * ps_ref[...] + pt_ref[...], 0.0)
    o_ref[0] = x1                     # primary branch -> first init_c channels

    # stash x1 at a lane-aligned offset for the shifted tap reads
    xpad_ref[:, _PAD:_PAD + M] = x1

    pos = jax.lax.broadcasted_iota(jnp.int32, (1, M), 1)
    hh = (pos // W) % H
    ww = pos % W

    dwv = dw_ref[...]                 # (init_c, 9), taps ordered (dy, dx)
    acc = jnp.zeros((init_c, M), jnp.float32)
    for dy in range(3):
        for dx in range(3):
            if (H == 1 and dy != 1) or (W == 1 and dx != 1):
                continue              # tap is fully outside the padded image
            k = dy * 3 + dx
            tap = dwv[:, k:k + 1]     # (init_c, 1)
            if dy == 1 and dx == 1:
                acc = acc + x1 * tap
                continue
            s = (dy - 1) * W + (dx - 1)
            shifted = xpad_ref[:, _PAD + s:_PAD + s + M]
            valid = ((hh >= 1 - dy) & (hh < H + 1 - dy) &
                     (ww >= 1 - dx) & (ww < W + 1 - dx))
            # jnp.where (select) so uninitialized scratch lanes never propagate
            acc = acc + jnp.where(valid, shifted, 0.0) * tap

    o_ref[1] = jnp.maximum(acc * ds_ref[...] + dt_ref[...], 0.0)


# ----------------------------------------------------------------------------
# Cached pallas_call builders (one compile per unique shape signature)
# ----------------------------------------------------------------------------
@functools.cache
def _pw_call(Cin, M, Cout, pre, relu, add_res, grid_m):
    TM = M // grid_m
    kernel = functools.partial(_pw_kernel, pre=pre, relu=relu, add_res=add_res)
    in_specs = [
        pl.BlockSpec((Cin, TM), lambda i: (0, i)),
        pl.BlockSpec((Cout, Cin), lambda i: (0, 0)),
        pl.BlockSpec((Cout, 1), lambda i: (0, 0)),
        pl.BlockSpec((Cout, 1), lambda i: (0, 0)),
    ]
    if pre:
        in_specs += [pl.BlockSpec((Cin, 1), lambda i: (0, 0)),
                     pl.BlockSpec((Cin, 1), lambda i: (0, 0))]
    if add_res:
        in_specs += [pl.BlockSpec((Cout, TM), lambda i: (0, i))]
    f = pl.pallas_call(
        kernel,
        out_shape=jax.ShapeDtypeStruct((Cout, M), jnp.float32),
        grid=(grid_m,),
        in_specs=in_specs,
        out_specs=pl.BlockSpec((Cout, TM), lambda i: (0, i)),
        compiler_params=pltpu.CompilerParams(
            dimension_semantics=("parallel",)),   # lets v7x use both TCs
    )
    return jax.jit(f)


@functools.cache
def _ghost_call(Cin, M, init_c, N, H, W):
    kernel = functools.partial(_ghost_kernel, N=N, H=H, W=W)
    f = pl.pallas_call(
        kernel,
        out_shape=jax.ShapeDtypeStruct((2, init_c, M), jnp.float32),
        grid=(1,),
        in_specs=[
            pl.BlockSpec((Cin, M), lambda i: (0, 0)),
            pl.BlockSpec((init_c, Cin), lambda i: (0, 0)),
            pl.BlockSpec((init_c, 1), lambda i: (0, 0)),
            pl.BlockSpec((init_c, 1), lambda i: (0, 0)),
            pl.BlockSpec((init_c, 9), lambda i: (0, 0)),
            pl.BlockSpec((init_c, 1), lambda i: (0, 0)),
            pl.BlockSpec((init_c, 1), lambda i: (0, 0)),
        ],
        out_specs=pl.BlockSpec((2, init_c, M), lambda i: (0, 0, 0)),
        scratch_shapes=[pltpu.VMEM((init_c, M + 2 * _PAD), jnp.float32)],
    )
    return jax.jit(f)


# ----------------------------------------------------------------------------
# Thin wrappers (channel-first flat activations:  a has shape (C, N*H*W))
# ----------------------------------------------------------------------------
def pointwise(x, wT, s, t, pre=None, res=None, relu=False):
    Cin, M = x.shape
    Cout = wT.shape[0]
    grid_m = 2 if (M >= 512 and M % 256 == 0) else 1
    args = [x, wT, s, t]
    if pre is not None:
        args += [pre[0], pre[1]]
    if res is not None:
        args.append(res)
    return _pw_call(Cin, M, Cout, pre is not None, relu, res is not None,
                    grid_m)(*args)


def ghost_module(x, p, n, h, w):
    Cin, M = x.shape
    init_c = p['prim_wT'].shape[0]
    out = _ghost_call(Cin, M, init_c, n, h, w)(
        x, p['prim_wT'], p['prim_s'], p['prim_t'],
        p['dw_w'], p['dw_s'], p['dw_t'])
    # concat([x1, x2], channel axis) == contiguous reshape of (2, init_c, M)
    # (oup == 2*init_c here since planes is even, so the [:oup] slice is a noop)
    return out.reshape(2 * init_c, M)


def maxpool2(t):  # F.max_pool2d(x, 2, stride=2)   (plain-JAX glue)
    a, n, h, w = t
    c = a.shape[0]
    x = a.reshape(c, n, h // 2, 2, w // 2, 2).max(axis=(3, 5))
    return (x.reshape(c, n * (h // 2) * (w // 2)), n, h // 2, w // 2)


def upsample2(t):  # F.interpolate(x, scale_factor=2), nearest  (plain-JAX glue)
    a, n, h, w = t
    c = a.shape[0]
    x = a.reshape(c, n, h, w)
    x = jnp.repeat(jnp.repeat(x, 2, axis=2), 2, axis=3)
    return (x.reshape(c, n * 2 * h * 2 * w), n, 2 * h, 2 * w)


# ----------------------------------------------------------------------------
# Model forward (mirrors the PyTorch module structure)
# ----------------------------------------------------------------------------
def bottleneck(t, p):
    a, n, h, w = t
    if 'down_wT' in p:
        residual = pointwise(a, p['down_wT'], p['down_s'], p['down_t'])
    else:
        residual = a
    # conv1( relu(bn1(x)) )   -- pre-activation fused into the matmul kernel
    out = pointwise(a, p['conv1_wT'], p['conv1_s'], p['conv1_t'],
                    pre=(p['bn1_s'], p['bn1_t']))
    out = ghost_module(out, p['ghost'], n, h, w)
    # conv3( relu(bn3(.)) ) + residual   -- residual add fused in-kernel
    out = pointwise(out, p['conv3_wT'], p['conv3_s'], p['conv3_t'],
                    pre=(p['bn3_s'], p['bn3_t']), res=residual)
    return (out, n, h, w)


def residual_seq(t, layers):
    for p in layers:
        t = bottleneck(t, p)
    return t


def hourglass(t, hgp, depth):
    def rec(n, t):
        up1 = residual_seq(t, hgp[n - 1][0])
        low1 = residual_seq(maxpool2(t), hgp[n - 1][1])
        if n > 1:
            low2 = rec(n - 1, low1)
        else:
            low2 = residual_seq(low1, hgp[n - 1][3])
        low3 = residual_seq(low2, hgp[n - 1][2])
        up2 = upsample2(low3)
        return (up1[0] + up2[0], up1[1], up1[2], up1[3])
    return rec(depth, t)


def hourglassnet_forward(x_nchw, P):
    N, Cimg, H0, W0 = x_nchw.shape
    Ho, Wo = H0 // 2, W0 // 2

    # --- stem: 7x7 / stride-2 / pad-3 conv + BN + ReLU ------------------------
    # TODO(synk): move the 49-tap im2col into a dedicated Pallas kernel.
    xcf = jnp.transpose(x_nchw.astype(jnp.float32), (1, 0, 2, 3))  # (3,N,H,W)
    xp = jnp.pad(xcf, ((0, 0), (0, 0), (3, 3), (3, 3)))
    cols = []
    for dy in range(7):
        for dx in range(7):
            cols.append(xp[:, :, dy:dy + H0:2, dx:dx + W0:2].reshape(Cimg, -1))
    col = jnp.concatenate(cols, axis=0)                    # (49*3, N*Ho*Wo)
    x = pointwise(col, P['stem_wT'], P['stem_s'], P['stem_t'], relu=True)

    t = (x, N, Ho, Wo)
    t = residual_seq(t, P['layer1'])
    t = maxpool2(t)
    t = residual_seq(t, P['layer2'])
    t = residual_seq(t, P['layer3'])

    outs = []
    num_stacks = len(P['hg'])
    for i in range(num_stacks):
        y = hourglass(t, P['hg'][i], HG_DEPTH)
        y = residual_seq(y, P['res'][i])
        a, n, h, w = y
        fc = P['fc'][i]
        ya = pointwise(a, fc['wT'], fc['s'], fc['t'], relu=True)
        sc = P['score'][i]
        score = pointwise(ya, sc['wT'], sc['s'], sc['t'])
        outs.append(jnp.transpose(score.reshape(-1, n, h, w), (1, 0, 2, 3)))
        if i < num_stacks - 1:
            fcp, scp = P['fc_'][i], P['score_'][i]
            # x = x + fc_(y) + score_(score)  -- both adds fused as residuals
            xa = pointwise(ya, fcp['wT'], fcp['s'], fcp['t'], res=t[0])
            xa = pointwise(score, scp['wT'], scp['s'], scp['t'], res=xa)
            t = (xa, n, h, w)
    return outs


# ----------------------------------------------------------------------------
# Deterministic synthetic parameter construction (shapes from __init__)
# ----------------------------------------------------------------------------
class KeyGen:
    def __init__(self, seed):
        self._key = jax.random.PRNGKey(seed)

    def next(self):
        self._key, sub = jax.random.split(self._key)
        return sub


def _col(v):
    return jnp.asarray(v, jnp.float32).reshape(-1, 1)


def _bn_fold(kg, c):
    gamma = 1.0 + 0.1 * jax.random.normal(kg.next(), (c,))
    beta = 0.05 * jax.random.normal(kg.next(), (c,))
    mean = 0.05 * jax.random.normal(kg.next(), (c,))
    var = 1.0 + 0.1 * jax.random.uniform(kg.next(), (c,))
    s = gamma * jax.lax.rsqrt(var + BN_EPS)
    t = beta - mean * s
    return s.astype(jnp.float32), t.astype(jnp.float32)


def _wT(kg, cin, cout, std=0.1):
    return (std * jax.random.normal(kg.next(), (cout, cin))).astype(jnp.float32)


def _bias(kg, cout):
    return (0.02 * jax.random.normal(kg.next(), (cout,))).astype(jnp.float32)


def _make_ghost(kg, inp, oup, ratio=2):
    init_c = math.ceil(oup / ratio)
    assert init_c * ratio == oup  # even oup -> concat slice [:oup] is a no-op
    p = {'prim_wT': _wT(kg, inp, init_c)}
    s1, t1 = _bn_fold(kg, init_c)
    p['prim_s'], p['prim_t'] = _col(s1), _col(t1)
    p['dw_w'] = (0.1 * jax.random.normal(kg.next(), (init_c, 9))).astype(jnp.float32)
    s2, t2 = _bn_fold(kg, init_c * (ratio - 1))
    p['dw_s'], p['dw_t'] = _col(s2), _col(t2)
    return p


def _make_bottleneck(kg, cin, planes, downsample):
    cout = int(planes * EXPANSION)
    bn1_s, bn1_t = _bn_fold(kg, cin)
    p = {'bn1_s': _col(bn1_s), 'bn1_t': _col(bn1_t),
         'conv1_wT': _wT(kg, cin, planes),
         'conv1_s': _col(jnp.ones((planes,))),
         'conv1_t': _col(_bias(kg, planes)),                 # bias folded as shift
         'ghost': _make_ghost(kg, planes, planes)}
    bn3_s, bn3_t = _bn_fold(kg, planes)
    p['bn3_s'], p['bn3_t'] = _col(bn3_s), _col(bn3_t)
    p['conv3_wT'] = _wT(kg, planes, cout)
    p['conv3_s'] = _col(jnp.ones((cout,)))
    p['conv3_t'] = _col(_bias(kg, cout))
    if downsample:
        p['down_wT'] = _wT(kg, cin, cout)
        p['down_s'] = _col(jnp.ones((cout,)))
        p['down_t'] = _col(_bias(kg, cout))
    return p


def _make_residual(kg, state, planes, blocks):
    cout = int(planes * EXPANSION)
    layers = [_make_bottleneck(kg, state['inplanes'], planes,
                               state['inplanes'] != cout)]
    state['inplanes'] = cout
    for _ in range(1, blocks):
        layers.append(_make_bottleneck(kg, state['inplanes'], planes, False))
    return layers


def _make_hourglass(kg, planes, num_blocks, depth):
    hgp = []
    for i in range(depth):
        n_res = 4 if i == 0 else 3
        res = [[_make_bottleneck(kg, int(planes * EXPANSION), planes, False)
                for _ in range(num_blocks)] for _ in range(n_res)]
        hgp.append(res)
    return hgp


def make_params(seed=0):
    kg = KeyGen(seed)
    P = {}
    # stem conv: (7,7,3,INPLANES) -> wT (INPLANES, 147); bias + BN folded.
    w1 = 0.1 * jax.random.normal(kg.next(), (7, 7, 3, INPLANES))
    b1 = _bias(kg, INPLANES)
    s1, t1 = _bn_fold(kg, INPLANES)
    P['stem_wT'] = jnp.asarray(w1.reshape(49 * 3, INPLANES).T, jnp.float32)
    P['stem_s'] = _col(s1)
    P['stem_t'] = _col(b1 * s1 + t1)

    state = {'inplanes': INPLANES}
    P['layer1'] = _make_residual(kg, state, INPLANES, 1)
    # layer2 uses self.inplanes *at call time* (== planes*expansion of layer1)
    P['layer2'] = _make_residual(kg, state, state['inplanes'], 1)
    P['layer3'] = _make_residual(kg, state, NUM_FEATS, 1)

    ch = int(NUM_FEATS * EXPANSION)
    for k in ('hg', 'res', 'fc', 'score', 'fc_', 'score_'):
        P[k] = []
    for i in range(NUM_STACKS):
        P['hg'].append(_make_hourglass(kg, NUM_FEATS, NUM_BLOCKS, HG_DEPTH))
        P['res'].append(_make_residual(kg, state, NUM_FEATS, NUM_BLOCKS))
        fs, ft = _bn_fold(kg, ch)
        fb = _bias(kg, ch)
        P['fc'].append({'wT': _wT(kg, ch, ch),
                        's': _col(fs), 't': _col(fb * fs + ft)})
        P['score'].append({'wT': _wT(kg, ch, NUM_CLASSES),
                           's': _col(jnp.ones((NUM_CLASSES,))),
                           't': _col(_bias(kg, NUM_CLASSES))})
        if i < NUM_STACKS - 1:
            P['fc_'].append({'wT': _wT(kg, ch, ch),
                             's': _col(jnp.ones((ch,))),
                             't': _col(_bias(kg, ch))})
            P['score_'].append({'wT': _wT(kg, NUM_CLASSES, ch),
                                's': _col(jnp.ones((ch,))),
                                't': _col(_bias(kg, ch))})
    return P


if __name__ == "__main__":
    key = jax.random.PRNGKey(0)
    # NCHW input, like the PyTorch module (RGB image).
    x = jax.random.normal(key, (2, 3, 64, 64), dtype=jnp.float32)
    params = make_params(seed=0)

    outs = hourglassnet_forward(x, params)
    outs = [jax.block_until_ready(o) for o in outs]

    assert len(outs) == NUM_STACKS
    for o in outs:
        assert o.shape == (2, NUM_CLASSES, 16, 16), o.shape
        assert bool(jnp.all(jnp.isfinite(o)))
    print("KERNEL_OK")
</pallas_src>

<mosaic_0001>
module attributes {stable_mosaic.version = 11 : i64} {
  func.func @_pw_kernel(%arg0: i32, %arg1: memref<147x1024xf32, #tpu.memory_space<vmem>>, %arg2: memref<8x147xf32, #tpu.memory_space<vmem>>, %arg3: memref<8x1xf32, #tpu.memory_space<vmem>>, %arg4: memref<8x1xf32, #tpu.memory_space<vmem>>, %arg5: memref<8x1024xf32, #tpu.memory_space<vmem>>) attributes {dimension_semantics = [#tpu.dimension_semantics<parallel>], iteration_bounds = array<i64: 2>, scalar_prefetch = 0 : i64, scratch_operands = 0 : i64, tpu.core_type = #tpu.core_type<tc>, window_params = [{transform_indices = @transform_0, window_bounds = array<i64: 147, 1024>}, {pipeline_mode = #tpu.pipeline_mode<synchronous>, transform_indices = @transform_1, window_bounds = array<i64: 8, 147>}, {pipeline_mode = #tpu.pipeline_mode<synchronous>, transform_indices = @transform_2, window_bounds = array<i64: 8, 1>}, {pipeline_mode = #tpu.pipeline_mode<synchronous>, transform_indices = @transform_3, window_bounds = array<i64: 8, 1>}, {transform_indices = @transform_4, window_bounds = array<i64: 8, 1024>}]} {
    %c0 = arith.constant 0 : index
    %c0_0 = arith.constant 0 : index
    %0 = vector.load %arg1[%c0, %c0_0] : memref<147x1024xf32, #tpu.memory_space<vmem>>, vector<147x1024xf32>
    %c0_1 = arith.constant 0 : index
    %c0_2 = arith.constant 0 : index
    %1 = vector.load %arg2[%c0_1, %c0_2] : memref<8x147xf32, #tpu.memory_space<vmem>>, vector<8x147xf32>
    %cst = arith.constant dense<0.000000e+00> : vector<8x1024xf32>
    %2 = tpu.matmul %1, %0, %cst {dimension_numbers = #tpu.dot_dimension_numbers<[1], [0], [0], [1], [0, 0, 1, 1], [], []>} : vector<8x147xf32>, vector<147x1024xf32>, vector<8x1024xf32> -> vector<8x1024xf32>
    %c0_3 = arith.constant 0 : index
    %c0_4 = arith.constant 0 : index
    %3 = vector.load %arg3[%c0_3, %c0_4] : memref<8x1xf32, #tpu.memory_space<vmem>>, vector<8x1xf32>
    %4 = vector.broadcast %3 : vector<8x1xf32> to vector<8x1024xf32>
    %5 = arith.mulf %2, %4 : vector<8x1024xf32>
    %c0_5 = arith.constant 0 : index
    %c0_6 = arith.constant 0 : index
    %6 = vector.load %arg4[%c0_5, %c0_6] : memref<8x1xf32, #tpu.memory_space<vmem>>, vector<8x1xf32>
    %7 = vector.broadcast %6 : vector<8x1xf32> to vector<8x1024xf32>
    %8 = arith.addf %5, %7 : vector<8x1024xf32>
    %cst_7 = arith.constant 0.000000e+00 : f32
    %9 = vector.broadcast %cst_7 : f32 to vector<8x1024xf32>
    %10 = arith.maximumf %8, %9 : vector<8x1024xf32>
    %c0_8 = arith.constant 0 : index
    %c0_9 = arith.constant 0 : index
    %11 = vector.load %arg5[%c0_8, %c0_9] : memref<8x1024xf32, #tpu.memory_space<vmem>>, vector<8x1024xf32>
    tpu.vector_store %arg5[%c0_8, %c0_9], %10 {strides = array<i32>} : memref<8x1024xf32, #tpu.memory_space<vmem>>, vector<8x1024xf32>,
    return
  }
  func.func @transform_0(%arg0: i32) -> (i32, i32) {
    %c0_i32 = arith.constant 0 : i32
    %c0_i32_0 = arith.constant 0 : i32
    return %c0_i32, %arg0 : i32, i32
  }
  func.func @transform_1(%arg0: i32) -> (i32, i32) {
    %c0_i32 = arith.constant 0 : i32
    %c0_i32_0 = arith.constant 0 : i32
    %c0_i32_1 = arith.constant 0 : i32
    return %c0_i32, %c0_i32_0 : i32, i32
  }
  func.func @transform_2(%arg0: i32) -> (i32, i32) {
    %c0_i32 = arith.constant 0 : i32
    %c0_i32_0 = arith.constant 0 : i32
    %c0_i32_1 = arith.constant 0 : i32
    return %c0_i32, %c0_i32_0 : i32, i32
  }
  func.func @transform_3(%arg0: i32) -> (i32, i32) {
    %c0_i32 = arith.constant 0 : i32
    %c0_i32_0 = arith.constant 0 : i32
    %c0_i32_1 = arith.constant 0 : i32
    return %c0_i32, %c0_i32_0 : i32, i32
  }
  func.func @transform_4(%arg0: i32) -> (i32, i32) {
    %c0_i32 = arith.constant 0 : i32
    %c0_i32_0 = arith.constant 0 : i32
    return %c0_i32, %arg0 : i32, i32
  }
}

</mosaic_0001>

<llo_original>
// kernel: tpu_custom_call.1
$region0: #{tpu_custom_call.1}
  #allocation0 [shape = 'u32[]', space=smem, size = 0x4, offset = 0x4, fixed_abs, tag = 'smem constant byte address 0x4 - core index']
  #allocation1 [shape = 'u32[144,128]{1,0:T(1,128)}', space=vmem, size = 0x12000, scoped, tag = 'internal scratch']
  %s0 = inlined_call_operand.hbm [shape: f32[147,2048], index: 0, kind: input, shape index: {}]
  %s1 = inlined_call_operand.hbm [shape: f32[8,147], index: 1, kind: input, shape index: {}]
  %s2 = inlined_call_operand.vmem [shape: f32[8,1], index: 2, kind: input, shape index: {}]
  %s3 = inlined_call_operand.vmem [shape: f32[8,1], index: 3, kind: input, shape index: {}]
  %s4 = inlined_call_operand.hbm [shape: f32[8,2048], index: 4, kind: output, shape index: {}]
  %s5 = sld [smem:[#allocation0]]
  $region57: #{tpu_custom_call.1} parent=0
    _
  %s7 = ssub.s32 1, %s5
  %s8 = scalar_select 0, %s7, %s5
  $region1: #{tpu_custom_call.1} parent=0
    #allocation2 [shape = 'u8[1245184]{0}', space=vmem, size = 0x130000, scoped, tag = 'input window, operand 0']
    #allocation3 [shape = 's32[2]{0}', space=sflag, size = 0x8, scoped, tag = 'scoped memory for tpu_custom_call.1']
    #allocation4 [shape = 's32[2]{0}', space=sflag, size = 0x8, scoped, tag = 'scoped memory for tpu_custom_call.1']
    #allocation5 [shape = 'u8[8192]{0}', space=vmem, size = 0x2000, scoped, tag = 'input window, operand 1, single buffered']
    #allocation6 [shape = 's32[1]{0}', space=sflag, size = 0x4, scoped, tag = 'scoped memory for tpu_custom_call.1']
    #allocation7 [shape = 'u8[65536]{0}', space=vmem, size = 0x10000, scoped, tag = 'output window, operand 0']
    %9 = vsyncpa [#allocation3], 0
    %s10 = scalar_lea.sflag [#allocation3], 1
    %11 = vsyncpa %s10, 0
    %12 = vsyncpa [#allocation6], 0
    %13 = vsyncpa [#allocation4], 0
    %s14 = scalar_lea.sflag [#allocation4], 1
    %15 = vsyncpa %s14, 0
    loop: start=0, step=1, limit=4
    $region2: #{tpu_custom_call.1} parent=1 // loop_pre_header
      _
    $region3: #{tpu_custom_call.1} parent=1 // loop_header
      %s17 = sphi 0, %s21
      %p18 = scmp.ge.s32.totalorder %s17, 4
      %s27 = sphi 0, %s29
      %s30 = sphi 0, %s27
      %s31 = sphi 0, %s30
      %s47 = sphi 0, %s31
      %s51 = sphi 0, %s51
      %s53 = sphi 0, %s51
      %s54 = sphi 0, %s53
      %s68 = sphi 0, %s54
      %s72 = sphi 0, %s72
      %s74 = sphi 0, %s72
      %s75 = sphi 0, %s74
      %s89 = sphi 0, %s75
      %s93 = sphi 0, %s93
      %s95 = sphi 0, %s93
      %s96 = sphi 0, %s95
      %s110 = sphi 0, %s96
      %s116 = sphi 0, %s118
      %s119 = sphi 0, %s116
      %s120 = sphi 0, %s119
      %s136 = sphi 0, %s120
    $region4: #{tpu_custom_call.1} parent=1 // loop_header_branch
      %20 = sbr.rel (%p18) target = $region8
    $region5: #{tpu_custom_call.1} parent=1 // loop_body
      %s22 = ssub.s32 %s17, 1
      %s23 = ssub.s32 %s17, 2
      %s24 = sadd.s32 %s17, 1
      %s25 = ssub.s32 %s17, %s24
      %p26 = scmp.eq.s32.totalorder %s25, 0
      %s28 = sadd.s32 %s27, 1
      %s29 = scalar_select %p26, %s27, %s28
      %p32 = pneg %p26
      %p33 = scmp.eq.s32.totalorder %s17, 1
      %p34 = por %p32, %p33
      %p35 = scmp.ne.s32.totalorder %s27, %s30
      %p36 = scmp.eq.s32.totalorder %s17, 0
      %p37 = por %p35, %p36
      %p38 = scmp.ne.s32.totalorder %s27, %s30
      %p39 = scmp.eq.s32.totalorder %s22, 1
      %p40 = por %p38, %p39
      %p41 = scmp.ne.s32.totalorder %s30, %s31
      %p42 = scmp.eq.s32.totalorder %s22, 0
      %p43 = por %p41, %p42
      %p44 = scmp.ne.s32.totalorder %s30, %s31
      %p45 = scmp.eq.s32.totalorder %s23, 1
      %p46 = por %p44, %p45
      %p48 = scmp.ne.s32.totalorder %s31, %s47
      %p49 = scmp.eq.s32.totalorder %s23, 0
      %p50 = por %p48, %p49
      %s52 = sadd.s32 %s51, 1
      %p55 = scmp.eq.s32.totalorder %s17, 1
      %p56 = scmp.ne.s32.totalorder %s51, %s53
      %p57 = scmp.eq.s32.totalorder %s17, 0
      %p58 = por %p56, %p57
      %p59 = scmp.ne.s32.totalorder %s51, %s53
      %p60 = scmp.eq.s32.totalorder %s22, 1
      %p61 = por %p59, %p60
      %p62 = scmp.ne.s32.totalorder %s53, %s54
      %p63 = scmp.eq.s32.totalorder %s22, 0
      %p64 = por %p62, %p63
      %p65 = scmp.ne.s32.totalorder %s53, %s54
      %p66 = scmp.eq.s32.totalorder %s23, 1
      %p67 = por %p65, %p66
      %p69 = scmp.ne.s32.totalorder %s54, %s68
      %p70 = scmp.eq.s32.totalorder %s23, 0
      %p71 = por %p69, %p70
      %s73 = sadd.s32 %s72, 1
      %p76 = scmp.eq.s32.totalorder %s17, 1
      %p77 = scmp.ne.s32.totalorder %s72, %s74
      %p78 = scmp.eq.s32.totalorder %s17, 0
      %p79 = por %p77, %p78
      %p80 = scmp.ne.s32.totalorder %s72, %s74
      %p81 = scmp.eq.s32.totalorder %s22, 1
      %p82 = por %p80, %p81
      %p83 = scmp.ne.s32.totalorder %s74, %s75
      %p84 = scmp.eq.s32.totalorder %s22, 0
      %p85 = por %p83, %p84
      %p86 = scmp.ne.s32.totalorder %s74, %s75
      %p87 = scmp.eq.s32.totalorder %s23, 1
      %p88 = por %p86, %p87
      %p90 = scmp.ne.s32.totalorder %s75, %s89
      %p91 = scmp.eq.s32.totalorder %s23, 0
      %p92 = por %p90, %p91
      %s94 = sadd.s32 %s93, 1
      %p97 = scmp.eq.s32.totalorder %s17, 1
      %p98 = scmp.ne.s32.totalorder %s93, %s95
      %p99 = scmp.eq.s32.totalorder %s17, 0
      %p100 = por %p98, %p99
      %p101 = scmp.ne.s32.totalorder %s93, %s95
      %p102 = scmp.eq.s32.totalorder %s22, 1
      %p103 = por %p101, %p102
      %p104 = scmp.ne.s32.totalorder %s95, %s96
      %p105 = scmp.eq.s32.totalorder %s22, 0
      %p106 = por %p104, %p105
      %p107 = scmp.ne.s32.totalorder %s95, %s96
      %p108 = scmp.eq.s32.totalorder %s23, 1
      %p109 = por %p107, %p108
      %p111 = scmp.ne.s32.totalorder %s96, %s110
      %p112 = scmp.eq.s32.totalorder %s23, 0
      %p113 = por %p111, %p112
      %s114 = ssub.s32 %s17, %s24
      %p115 = scmp.eq.s32.totalorder %s114, 0
      %s117 = sadd.s32 %s116, 1
      %s118 = scalar_select %p115, %s116, %s117
      %p121 = pneg %p115
      %p122 = scmp.eq.s32.totalorder %s17, 1
      %p123 = por %p121, %p122
      %p124 = scmp.ne.s32.totalorder %s116, %s119
      %p125 = scmp.eq.s32.totalorder %s17, 0
      %p126 = por %p124, %p125
      %p127 = scmp.ne.s32.totalorder %s116, %s119
      %p128 = scmp.eq.s32.totalorder %s22, 1
      %p129 = por %p127, %p128
      %p130 = scmp.ne.s32.totalorder %s119, %s120
      %p131 = scmp.eq.s32.totalorder %s22, 0
      %p132 = por %p130, %p131
      %p133 = scmp.ne.s32.totalorder %s119, %s120
      %p134 = scmp.eq.s32.totalorder %s23, 1
      %p135 = por %p133, %p134
      %p137 = scmp.ne.s32.totalorder %s120, %s136
      %p138 = scmp.eq.s32.totalorder %s23, 0
      %p139 = por %p137, %p138
      %p140 = scmp.le.s32.totalorder 1, %s17
      %p141 = scmp.lt.s32.totalorder %s17, 3
      %p142 = pnand %p140, %p141
      %p143 = pneg %p142
      // Predicated region
      $region9: #{tpu_custom_call.1} parent=5 // pred_check
        _
      $region10: #{tpu_custom_call.1} parent=5 // pred_check_branch
        %145 = sbr.rel (%p142) target = $region12
      $region11: #{tpu_custom_call.1} parent=5 // pred_region
        %s146 = ssub.s32 %s17, 1
        // Predicated region
        $region13: #{tpu_custom_call.1} parent=11 // pred_check
          %p147 = pneg %p64
        $region14: #{tpu_custom_call.1} parent=11 // pred_check_branch
          %149 = sbr.rel (%p147) target = $region16
        $region15: #{tpu_custom_call.1} parent=11 // pred_region
          %s151 = ssub.s32 256, 256
          %152 = vsyncadd [#allocation6], %s151
          %s154 = sshll.u32 [#allocation5], 4
          %s155 = int_to_ptr.vmem [resolvable:$true] %s154
          %157 = dma.hbm_to_vmem [thread:$0]  %s1, 256, %s155, [#allocation6]
        $region16: #{tpu_custom_call.1} parent=11 // pred_fallthru
          _
        // Predicated region
        $region17: #{tpu_custom_call.1} parent=11 // pred_check
          %p158 = pneg %p85
        $region18: #{tpu_custom_call.1} parent=11 // pred_check_branch
          %160 = sbr.rel (%p158) target = $region20
        $region19: #{tpu_custom_call.1} parent=11 // pred_region
          _
        $region20: #{tpu_custom_call.1} parent=11 // pred_fallthru
          _
        // Predicated region
        $region21: #{tpu_custom_call.1} parent=11 // pred_check
          %p161 = pneg %p106
        $region22: #{tpu_custom_call.1} parent=11 // pred_check_branch
          %163 = sbr.rel (%p161) target = $region24
        $region23: #{tpu_custom_call.1} parent=11 // pred_region
          _
        $region24: #{tpu_custom_call.1} parent=11 // pred_fallthru
          _
      $region12: #{tpu_custom_call.1} parent=5 // pred_fallthru
        _
      %p164 = scmp.lt.s32.totalorder %s17, 2
      // Predicated region
      $region25: #{tpu_custom_call.1} parent=5 // pred_check
        %p165 = pneg %p164
      $region26: #{tpu_custom_call.1} parent=5 // pred_check_branch
        %167 = sbr.rel (%p165) target = $region28
      $region27: #{tpu_custom_call.1} parent=5 // pred_region
        // Predicated region
        $region29: #{tpu_custom_call.1} parent=27 // pred_check
          %p168 = pneg %p37
        $region30: #{tpu_custom_call.1} parent=27 // pred_check_branch
          %170 = sbr.rel (%p168) target = $region32
        $region31: #{tpu_custom_call.1} parent=27 // pred_region
          %s171 = sand.u32 %s27, 1
          %s172 = scalar_lea.sflag [#allocation3], %s171
          %s173 = sand.u32 %s27, 1
          %s174 = smul.addr %s173, 1216
          %s175 = scalar_lea.vmem [#allocation2], %s174
          %s176 = smul.u32 8, %s17
          %s178 = ssub.s32 19456, 19456
          %179 = vsyncadd %s172, %s178
          %s180 = smul.addr %s176, 128
          %s181 = scalar_lea.hbm %s0, %s180
          %s182 = sshll.u32 %s175, 4
          %s183 = int_to_ptr.vmem [resolvable:$true] %s182
          %188 = dma.hbm_to_vmem [thread:$0]  %s181, 19456, %s183, %s172, 2048, 1024, 64
        $region32: #{tpu_custom_call.1} parent=27 // pred_fallthru
          _
      $region28: #{tpu_custom_call.1} parent=5 // pred_fallthru
        _
      %p189 = scmp.le.s32.totalorder 1, %s17
      %p190 = scmp.lt.s32.totalorder %s17, 3
      %p191 = pnand %p189, %p190
      %p192 = pneg %p191
      // Predicated region
      $region33: #{tpu_custom_call.1} parent=5 // pred_check
        _
      $region34: #{tpu_custom_call.1} parent=5 // pred_check_branch
        %194 = sbr.rel (%p191) target = $region36
      $region35: #{tpu_custom_call.1} parent=5 // pred_region
        %s195 = ssub.s32 %s17, 1
        %s196 = sand.u32 %s30, 1
        %s197 = scalar_lea.sflag [#allocation3], %s196
        %s198 = sand.u32 %s30, 1
        %s199 = smul.addr %s198, 1216
        %s200 = scalar_lea.vmem [#allocation2], %s199
        // Predicated region
        $region37: #{tpu_custom_call.1} parent=35 // pred_check
          %p201 = pneg %p43
        $region38: #{tpu_custom_call.1} parent=35 // pred_check_branch
          %203 = sbr.rel (%p201) target = $region40
        $region39: #{tpu_custom_call.1} parent=35 // pred_region
          %204 = dma.done %s197, 19456
        $region40: #{tpu_custom_call.1} parent=35 // pred_fallthru
          _
        // Predicated region
        $region41: #{tpu_custom_call.1} parent=35 // pred_check
          %p205 = pneg %p64
        $region42: #{tpu_custom_call.1} parent=35 // pred_check_branch
          %207 = sbr.rel (%p205) target = $region44
        $region43: #{tpu_custom_call.1} parent=35 // pred_region
          %208 = dma.done [#allocation6], 256
        $region44: #{tpu_custom_call.1} parent=35 // pred_fallthru
          _
        %s209 = sand.u32 %s30, 1
        %s210 = scalar_lea.sflag [#allocation3], %s209
        %s211 = sand.u32 %s30, 1
        %s212 = smul.addr %s211, 1216
        %s213 = scalar_lea.vmem [#allocation2], %s212
        %p214 = pneg %p43
        %p215 = pneg %p40
        %p216 = pneg %p64
        %p217 = pneg %p61
        %p218 = pneg %p85
        %p219 = pneg %p82
        %p220 = pneg %p106
        %p221 = pneg %p103
        %p222 = pneg %p132
        %p223 = pneg %p129
        %s224 = sand.u32 %s119, 1
        %s225 = scalar_lea.sflag [#allocation4], %s224
        %s226 = sand.u32 %s119, 1
        %s227 = smul.addr %s226, 64
        %s228 = scalar_lea.vmem [#allocation7], %s227
        %s229 = smul.u32 8, %s22
        %s230 = smul.u32 8, %s22
        %v231 = vld [vmem:[%s200] sm:$0xff]
        %v232 = vld [vmem:[%s200 + $0x8] sm:$0xff]
        %v233 = vld [vmem:[%s200 + $0x10] sm:$0xff]
        %v234 = vld [vmem:[%s200 + $0x18] sm:$0xff]
        %v235 = vld [vmem:[%s200 + $0x20] sm:$0xff]
        %v236 = vld [vmem:[%s200 + $0x28] sm:$0xff]
        %v237 = vld [vmem:[%s200 + $0x30] sm:$0xff]
        %v238 = vld [vmem:[%s200 + $0x38] sm:$0xff]
        %v239 = vld [vmem:[%s200 + $0x40] sm:$0xff]
        %v240 = vld [vmem:[%s200 + $0x48] sm:$0xff]
        %v241 = vld [vmem:[%s200 + $0x50] sm:$0xff]
        %v242 = vld [vmem:[%s200 + $0x58] sm:$0xff]
        %v243 = vld [vmem:[%s200 + $0x60] sm:$0xff]
        %v244 = vld [vmem:[%s200 + $0x68] sm:$0xff]
        %v245 = vld [vmem:[%s200 + $0x70] sm:$0xff]
        %v246 = vld [vmem:[%s200 + $0x78] sm:$0xff]
        %v247 = vld [vmem:[%s200 + $0x80] sm:$0xff]
        %v248 = vld [vmem:[%s200 + $0x88] sm:$0xff]
        %v249 = vld [vmem:[%s200 + $0x90] sm:$0xff]
        %v250 = vld [vmem:[%s200 + $0x98] sm:$0xff]
        %v251 = vld [vmem:[%s200 + $0xa0] sm:$0xff]
        %v252 = vld [vmem:[%s200 + $0xa8] sm:$0xff]
        %v253 = vld [vmem:[%s200 + $0xb0] sm:$0xff]
        %v254 = vld [vmem:[%s200 + $0xb8] sm:$0xff]
        %v255 = vld [vmem:[%s200 + $0xc0] sm:$0xff]
        %v256 = vld [vmem:[%s200 + $0xc8] sm:$0xff]
        %v257 = vld [vmem:[%s200 + $0xd0] sm:$0xff]
        %v258 = vld [vmem:[%s200 + $0xd8] sm:$0xff]
        %v259 = vld [vmem:[%s200 + $0xe0] sm:$0xff]
        %v260 = vld [vmem:[%s200 + $0xe8] sm:$0xff]
        %v261 = vld [vmem:[%s200 + $0xf0] sm:$0xff]
        %v262 = vld [vmem:[%s200 + $0xf8] sm:$0xff]
        %v263 = vld [vmem:[%s200 + $0x100] sm:$0xff]
        %v264 = vld [vmem:[%s200 + $0x108] sm:$0xff]
        %v265 = vld [vmem:[%s200 + $0x110] sm:$0xff]
        %v266 = vld [vmem:[%s200 + $0x118] sm:$0xff]
        %v267 = vld [vmem:[%s200 + $0x120] sm:$0xff]
        %v268 = vld [vmem:[%s200 + $0x128] sm:$0xff]
        %v269 = vld [vmem:[%s200 + $0x130] sm:$0xff]
        %v270 = vld [vmem:[%s200 + $0x138] sm:$0xff]
        %v271 = vld [vmem:[%s200 + $0x140] sm:$0xff]
        %v272 = vld [vmem:[%s200 + $0x148] sm:$0xff]
        %v273 = vld [vmem:[%s200 + $0x150] sm:$0xff]
        %v274 = vld [vmem:[%s200 + $0x158] sm:$0xff]
        %v275 = vld [vmem:[%s200 + $0x160] sm:$0xff]
        %v276 = vld [vmem:[%s200 + $0x168] sm:$0xff]
        %v277 = vld [vmem:[%s200 + $0x170] sm:$0xff]
        %v278 = vld [vmem:[%s200 + $0x178] sm:$0xff]
        %v279 = vld [vmem:[%s200 + $0x180] sm:$0xff]
        %v280 = vld [vmem:[%s200 + $0x188] sm:$0xff]
        %v281 = vld [vmem:[%s200 + $0x190] sm:$0xff]
        %v282 = vld [vmem:[%s200 + $0x198] sm:$0xff]
        %v283 = vld [vmem:[%s200 + $0x1a0] sm:$0xff]
        %v284 = vld [vmem:[%s200 + $0x1a8] sm:$0xff]
        %v285 = vld [vmem:[%s200 + $0x1b0] sm:$0xff]
        %v286 = vld [vmem:[%s200 + $0x1b8] sm:$0xff]
        %v287 = vld [vmem:[%s200 + $0x1c0] sm:$0xff]
        %v288 = vld [vmem:[%s200 + $0x1c8] sm:$0xff]
        %v289 = vld [vmem:[%s200 + $0x1d0] sm:$0xff]
        %v290 = vld [vmem:[%s200 + $0x1d8] sm:$0xff]
        %v291 = vld [vmem:[%s200 + $0x1e0] sm:$0xff]
        %v292 = vld [vmem:[%s200 + $0x1e8] sm:$0xff]
        %v293 = vld [vmem:[%s200 + $0x1f0] sm:$0xff]
        %v294 = vld [vmem:[%s200 + $0x1f8] sm:$0xff]
        %v295 = vld [vmem:[%s200 + $0x200] sm:$0xff]
        %v296 = vld [vmem:[%s200 + $0x208] sm:$0xff]
        %v297 = vld [vmem:[%s200 + $0x210] sm:$0xff]
        %v298 = vld [vmem:[%s200 + $0x218] sm:$0xff]
        %v299 = vld [vmem:[%s200 + $0x220] sm:$0xff]
        %v300 = vld [vmem:[%s200 + $0x228] sm:$0xff]
        %v301 = vld [vmem:[%s200 + $0x230] sm:$0xff]
        %v302 = vld [vmem:[%s200 + $0x238] sm:$0xff]
        %v303 = vld [vmem:[%s200 + $0x240] sm:$0xff]
        %v304 = vld [vmem:[%s200 + $0x248] sm:$0xff]
        %v305 = vld [vmem:[%s200 + $0x250] sm:$0xff]
        %v306 = vld [vmem:[%s200 + $0x258] sm:$0xff]
        %v307 = vld [vmem:[%s200 + $0x260] sm:$0xff]
        %v308 = vld [vmem:[%s200 + $0x268] sm:$0xff]
        %v309 = vld [vmem:[%s200 + $0x270] sm:$0xff]
        %v310 = vld [vmem:[%s200 + $0x278] sm:$0xff]
        %v311 = vld [vmem:[%s200 + $0x280] sm:$0xff]
        %v312 = vld [vmem:[%s200 + $0x288] sm:$0xff]
        %v313 = vld [vmem:[%s200 + $0x290] sm:$0xff]
        %v314 = vld [vmem:[%s200 + $0x298] sm:$0xff]
        %v315 = vld [vmem:[%s200 + $0x2a0] sm:$0xff]
        %v316 = vld [vmem:[%s200 + $0x2a8] sm:$0xff]
        %v317 = vld [vmem:[%s200 + $0x2b0] sm:$0xff]
        %v318 = vld [vmem:[%s200 + $0x2b8] sm:$0xff]
        %v319 = vld [vmem:[%s200 + $0x2c0] sm:$0xff]
        %v320 = vld [vmem:[%s200 + $0x2c8] sm:$0xff]
        %v321 = vld [vmem:[%s200 + $0x2d0] sm:$0xff]
        %v322 = vld [vmem:[%s200 + $0x2d8] sm:$0xff]
        %v323 = vld [vmem:[%s200 + $0x2e0] sm:$0xff]
        %v324 = vld [vmem:[%s200 + $0x2e8] sm:$0xff]
        %v325 = vld [vmem:[%s200 + $0x2f0] sm:$0xff]
        %v326 = vld [vmem:[%s200 + $0x2f8] sm:$0xff]
        %v327 = vld [vmem:[%s200 + $0x300] sm:$0xff]
        %v328 = vld [vmem:[%s200 + $0x308] sm:$0xff]
        %v329 = vld [vmem:[%s200 + $0x310] sm:$0xff]
        %v330 = vld [vmem:[%s200 + $0x318] sm:$0xff]
        %v331 = vld [vmem:[%s200 + $0x320] sm:$0xff]
        %v332 = vld [vmem:[%s200 + $0x328] sm:$0xff]
        %v333 = vld [vmem:[%s200 + $0x330] sm:$0xff]
        %v334 = vld [vmem:[%s200 + $0x338] sm:$0xff]
        %v335 = vld [vmem:[%s200 + $0x340] sm:$0xff]
        %v336 = vld [vmem:[%s200 + $0x348] sm:$0xff]
        %v337 = vld [vmem:[%s200 + $0x350] sm:$0xff]
        %v338 = vld [vmem:[%s200 + $0x358] sm:$0xff]
        %v339 = vld [vmem:[%s200 + $0x360] sm:$0xff]
        %v340 = vld [vmem:[%s200 + $0x368] sm:$0xff]
        %v341 = vld [vmem:[%s200 + $0x370] sm:$0xff]
        %v342 = vld [vmem:[%s200 + $0x378] sm:$0xff]
        %v343 = vld [vmem:[%s200 + $0x380] sm:$0xff]
        %v344 = vld [vmem:[%s200 + $0x388] sm:$0xff]
        %v345 = vld [vmem:[%s200 + $0x390] sm:$0xff]
        %v346 = vld [vmem:[%s200 + $0x398] sm:$0xff]
        %v347 = vld [vmem:[%s200 + $0x3a0] sm:$0xff]
        %v348 = vld [vmem:[%s200 + $0x3a8] sm:$0xff]
        %v349 = vld [vmem:[%s200 + $0x3b0] sm:$0xff]
        %v350 = vld [vmem:[%s200 + $0x3b8] sm:$0xff]
        %v351 = vld [vmem:[%s200 + $0x3c0] sm:$0xff]
        %v352 = vld [vmem:[%s200 + $0x3c8] sm:$0xff]
        %v353 = vld [vmem:[%s200 + $0x3d0] sm:$0xff]
        %v354 = vld [vmem:[%s200 + $0x3d8] sm:$0xff]
        %v355 = vld [vmem:[%s200 + $0x3e0] sm:$0xff]
        %v356 = vld [vmem:[%s200 + $0x3e8] sm:$0xff]
        %v357 = vld [vmem:[%s200 + $0x3f0] sm:$0xff]
        %v358 = vld [vmem:[%s200 + $0x3f8] sm:$0xff]
        %v359 = vld [vmem:[%s200 + $0x400] sm:$0xff]
        %v360 = vld [vmem:[%s200 + $0x408] sm:$0xff]
        %v361 = vld [vmem:[%s200 + $0x410] sm:$0xff]
        %v362 = vld [vmem:[%s200 + $0x418] sm:$0xff]
        %v363 = vld [vmem:[%s200 + $0x420] sm:$0xff]
        %v364 = vld [vmem:[%s200 + $0x428] sm:$0xff]
        %v365 = vld [vmem:[%s200 + $0x430] sm:$0xff]
        %v366 = vld [vmem:[%s200 + $0x438] sm:$0xff]
        %v367 = vld [vmem:[%s200 + $0x440] sm:$0xff]
        %v368 = vld [vmem:[%s200 + $0x448] sm:$0xff]
        %v369 = vld [vmem:[%s200 + $0x450] sm:$0xff]
        %v370 = vld [vmem:[%s200 + $0x458] sm:$0xff]
        %v371 = vld [vmem:[%s200 + $0x460] sm:$0xff]
        %v372 = vld [vmem:[%s200 + $0x468] sm:$0xff]
        %v373 = vld [vmem:[%s200 + $0x470] sm:$0xff]
        %v374 = vld [vmem:[%s200 + $0x478] sm:$0xff]
        %v375 = vld [vmem:[%s200 + $0x480] sm:$0x7]
        %v376 = vld [vmem:[%s200 + $0x488] sm:$0x7]
        %v377 = vld [vmem:[%s200 + $0x490] sm:$0x7]
        %v378 = vld [vmem:[%s200 + $0x498] sm:$0x7]
        %v379 = vld [vmem:[%s200 + $0x4a0] sm:$0x7]
        %v380 = vld [vmem:[%s200 + $0x4a8] sm:$0x7]
        %v381 = vld [vmem:[%s200 + $0x4b0] sm:$0x7]
        %v382 = vld [vmem:[%s200 + $0x4b8] sm:$0x7]
        %v383 = vld [vmem:[#allocation5] sm:$0xff]
        %v384 = vld [vmem:[#allocation5 + $0x8] sm:$0xff]
        %vm385 = vcmask 154624
        %v387 = vsel %vm385, %v384, 0
        %vm389 = vcmask 1042432
        %v391 = vsel %vm389, %v375, 0
        %v394 = vsel %vm389, %v376, 0
        %v397 = vsel %vm389, %v377, 0
        %v400 = vsel %vm389, %v378, 0
        %v403 = vsel %vm389, %v379, 0
        %v406 = vsel %vm389, %v380, 0
        %v409 = vsel %vm389, %v381, 0
        %v412 = vsel %vm389, %v382, 0
        %414 = vmatprep.subr.mxu0 %v232
        %415 = vmatpush1.msra.mxu0 %v231
        %416 = vmatprep.subr.mxu0 %v240
        %417 = vmatpush1.msra.mxu0 %v239
        %418 = vmatprep.subr.mxu0 %v248
        %419 = vmatpush1.msra.mxu0 %v247
        %420 = vmatprep.subr.mxu0 %v256
        %421 = vmatpush1.msra.mxu0 %v255
        %422 = vmatprep.subr.mxu0 %v264
        %423 = vmatpush1.msra.mxu0 %v263
        %424 = vmatprep.subr.mxu0 %v272
        %425 = vmatpush1.msra.mxu0 %v271
        %426 = vmatprep.subr.mxu0 %v280
        %427 = vmatpush1.msra.mxu0 %v279
        %428 = vmatprep.subr.mxu0 %v288
        %429 = vmatpush1.msra.mxu0 %v287
        %430 = vmatprep.subr.mxu0 %v296
        %431 = vmatpush1.msra.mxu0 %v295
        %432 = vmatprep.subr.mxu0 %v304
        %433 = vmatpush1.msra.mxu0 %v303
        %434 = vmatprep.subr.mxu0 %v312
        %435 = vmatpush1.msra.mxu0 %v311
        %436 = vmatprep.subr.mxu0 %v320
        %437 = vmatpush1.msra.mxu0 %v319
        %438 = vmatprep.subr.mxu0 %v328
        %439 = vmatpush1.msra.mxu0 %v327
        %440 = vmatprep.subr.mxu0 %v336
        %441 = vmatpush1.msra.mxu0 %v335
        %442 = vmatprep.subr.mxu0 %v344
        %443 = vmatpush1.msra.mxu0 %v343
        %444 = vmatprep.subr.mxu0 %v352
        %445 = vmatpush1.msra.mxu0 %v351
        %446 = vmatprep.subr.mxu0 %v360
        %447 = vmatpush1.msra.mxu0 %v359
        %448 = vmatprep.subr.mxu0 %v368
        %449 = vmatpush1.msra.mxu0 %v367
        %450 = vmatprep.subr.mxu0 %v394
        %451 = vmatpush1.msra.mxu0 %v391
        %452 = vmatprep.subr.mxu0 0.0
        %453 = vmatpush1.msra.mxu0 0.0
        %454 = vmatprep.subr.mxu0 0.0
        %455 = vmatpush1.msra.mxu0 0.0
        %456 = vmatprep.subr.mxu0 0.0
        %457 = vmatpush1.msra.mxu0 0.0
        %458 = vmatprep.subr.mxu0 0.0
        %459 = vmatpush1.msra.mxu0 0.0
        %460 = vmatprep.subr.mxu0 0.0
        %461 = vmatpush1.msra.mxu0 0.0
        %462 = vmatprep.subr.mxu0 0.0
        %463 = vmatpush1.msra.mxu0 0.0
        %464 = vmatprep.subr.mxu0 0.0
        %465 = vmatpush1.msra.mxu0 0.0
        %466 = vmatprep.subr.mxu0 0.0
        %467 = vmatpush1.msra.mxu0 0.0
        %468 = vmatprep.subr.mxu0 0.0
        %469 = vmatpush1.msra.mxu0 0.0
        %470 = vmatprep.subr.mxu0 0.0
        %471 = vmatpush1.msra.mxu0 0.0
        %472 = vmatprep.subr.mxu0 0.0
        %473 = vmatpush1.msra.mxu0 0.0
        %474 = vmatprep.subr.mxu0 0.0
        %475 = vmatpush1.msra.mxu0 0.0
        %476 = vmatprep.subr.mxu0 0.0
        %477 = vmatpush1.msra.mxu0 0.0
        %478 = vmatprep.mubr.f32.mxu0 %v387
        %479 = vmatmul.mubr.f32.gmra.mrb[0].mxu0 %v383
        %v480 = vpop.f32.mrb[0].mxu0
        %v481 = vadd.f32 0.0, %v480
        %v482 = vpop.f32.mrb[0].mxu0
        %v483 = vadd.f32 0.0, %v482
        %484 = vdwg.mxu0
        %485 = vmatprep.subr.mxu0 %v234
        %486 = vmatpush1.msra.mxu0 %v233
        %487 = vmatprep.subr.mxu0 %v242
        %488 = vmatpush1.msra.mxu0 %v241
        %489 = vmatprep.subr.mxu0 %v250
        %490 = vmatpush1.msra.mxu0 %v249
        %491 = vmatprep.subr.mxu0 %v258
        %492 = vmatpush1.msra.mxu0 %v257
        %493 = vmatprep.subr.mxu0 %v266
        %494 = vmatpush1.msra.mxu0 %v265
        %495 = vmatprep.subr.mxu0 %v274
        %496 = vmatpush1.msra.mxu0 %v273
        %497 = vmatprep.subr.mxu0 %v282
        %498 = vmatpush1.msra.mxu0 %v281
        %499 = vmatprep.subr.mxu0 %v290
        %500 = vmatpush1.msra.mxu0 %v289
        %501 = vmatprep.subr.mxu0 %v298
        %502 = vmatpush1.msra.mxu0 %v297
        %503 = vmatprep.subr.mxu0 %v306
        %504 = vmatpush1.msra.mxu0 %v305
        %505 = vmatprep.subr.mxu0 %v314
        %506 = vmatpush1.msra.mxu0 %v313
        %507 = vmatprep.subr.mxu0 %v322
        %508 = vmatpush1.msra.mxu0 %v321
        %509 = vmatprep.subr.mxu0 %v330
        %510 = vmatpush1.msra.mxu0 %v329
        %511 = vmatprep.subr.mxu0 %v338
        %512 = vmatpush1.msra.mxu0 %v337
        %513 = vmatprep.subr.mxu0 %v346
        %514 = vmatpush1.msra.mxu0 %v345
        %515 = vmatprep.subr.mxu0 %v354
        %516 = vmatpush1.msra.mxu0 %v353
        %517 = vmatprep.subr.mxu0 %v362
        %518 = vmatpush1.msra.mxu0 %v361
        %519 = vmatprep.subr.mxu0 %v370
        %520 = vmatpush1.msra.mxu0 %v369
        %521 = vmatprep.subr.mxu0 %v400
        %522 = vmatpush1.msra.mxu0 %v397
        %523 = vmatprep.subr.mxu0 0.0
        %524 = vmatpush1.msra.mxu0 0.0
        %525 = vmatprep.subr.mxu0 0.0
        %526 = vmatpush1.msra.mxu0 0.0
        %527 = vmatprep.subr.mxu0 0.0
        %528 = vmatpush1.msra.mxu0 0.0
        %529 = vmatprep.subr.mxu0 0.0
        %530 = vmatpush1.msra.mxu0 0.0
        %531 = vmatprep.subr.mxu0 0.0
        %532 = vmatpush1.msra.mxu0 0.0
        %533 = vmatprep.subr.mxu0 0.0
        %534 = vmatpush1.msra.mxu0 0.0
        %535 = vmatprep.subr.mxu0 0.0
        %536 = vmatpush1.msra.mxu0 0.0
        %537 = vmatprep.subr.mxu0 0.0
        %538 = vmatpush1.msra.mxu0 0.0
        %539 = vmatprep.subr.mxu0 0.0
        %540 = vmatpush1.msra.mxu0 0.0
        %541 = vmatprep.subr.mxu0 0.0
        %542 = vmatpush1.msra.mxu0 0.0
        %543 = vmatprep.subr.mxu0 0.0
        %544 = vmatpush1.msra.mxu0 0.0
        %545 = vmatprep.subr.mxu0 0.0
        %546 = vmatpush1.msra.mxu0 0.0
        %547 = vmatprep.subr.mxu0 0.0
        %548 = vmatpush1.msra.mxu0 0.0
        %549 = vmatprep.mubr.f32.mxu0 %v387
        %550 = vmatmul.mubr.f32.gmra.mrb[0].mxu0 %v383
        %v551 = vpop.f32.mrb[0].mxu0
        %v552 = vadd.f32 0.0, %v551
        %v553 = vpop.f32.mrb[0].mxu0
        %v554 = vadd.f32 0.0, %v553
        %555 = vdwg.mxu0
        %556 = vmatprep.subr.mxu0 %v236
        %557 = vmatpush1.msra.mxu0 %v235
        %558 = vmatprep.subr.mxu0 %v244
        %559 = vmatpush1.msra.mxu0 %v243
        %560 = vmatprep.subr.mxu0 %v252
        %561 = vmatpush1.msra.mxu0 %v251
        %562 = vmatprep.subr.mxu0 %v260
        %563 = vmatpush1.msra.mxu0 %v259
        %564 = vmatprep.subr.mxu0 %v268
        %565 = vmatpush1.msra.mxu0 %v267
        %566 = vmatprep.subr.mxu0 %v276
        %567 = vmatpush1.msra.mxu0 %v275
        %568 = vmatprep.subr.mxu0 %v284
        %569 = vmatpush1.msra.mxu0 %v283
        %570 = vmatprep.subr.mxu0 %v292
        %571 = vmatpush1.msra.mxu0 %v291
        %572 = vmatprep.subr.mxu0 %v300
        %573 = vmatpush1.msra.mxu0 %v299
        %574 = vmatprep.subr.mxu0 %v308
        %575 = vmatpush1.msra.mxu0 %v307
        %576 = vmatprep.subr.mxu0 %v316
        %577 = vmatpush1.msra.mxu0 %v315
        %578 = vmatprep.subr.mxu0 %v324
        %579 = vmatpush1.msra.mxu0 %v323
        %580 = vmatprep.subr.mxu0 %v332
        %581 = vmatpush1.msra.mxu0 %v331
        %582 = vmatprep.subr.mxu0 %v340
        %583 = vmatpush1.msra.mxu0 %v339
        %584 = vmatprep.subr.mxu0 %v348
        %585 = vmatpush1.msra.mxu0 %v347
        %586 = vmatprep.subr.mxu0 %v356
        %587 = vmatpush1.msra.mxu0 %v355
        %588 = vmatprep.subr.mxu0 %v364
        %589 = vmatpush1.msra.mxu0 %v363
        %590 = vmatprep.subr.mxu0 %v372
        %591 = vmatpush1.msra.mxu0 %v371
        %592 = vmatprep.subr.mxu0 %v406
        %593 = vmatpush1.msra.mxu0 %v403
        %594 = vmatprep.subr.mxu0 0.0
        %595 = vmatpush1.msra.mxu0 0.0
        %596 = vmatprep.subr.mxu0 0.0
        %597 = vmatpush1.msra.mxu0 0.0
        %598 = vmatprep.subr.mxu0 0.0
        %599 = vmatpush1.msra.mxu0 0.0
        %600 = vmatprep.subr.mxu0 0.0
        %601 = vmatpush1.msra.mxu0 0.0
        %602 = vmatprep.subr.mxu0 0.0
        %603 = vmatpush1.msra.mxu0 0.0
        %604 = vmatprep.subr.mxu0 0.0
        %605 = vmatpush1.msra.mxu0 0.0
        %606 = vmatprep.subr.mxu0 0.0
        %607 = vmatpush1.msra.mxu0 0.0
        %608 = vmatprep.subr.mxu0 0.0
        %609 = vmatpush1.msra.mxu0 0.0
        %610 = vmatprep.subr.mxu0 0.0
        %611 = vmatpush1.msra.mxu0 0.0
        %612 = vmatprep.subr.mxu0 0.0
        %613 = vmatpush1.msra.mxu0 0.0
        %614 = vmatprep.subr.mxu0 0.0
        %615 = vmatpush1.msra.mxu0 0.0
        %616 = vmatprep.subr.mxu0 0.0
        %617 = vmatpush1.msra.mxu0 0.0
        %618 = vmatprep.subr.mxu0 0.0
        %619 = vmatpush1.msra.mxu0 0.0
        %620 = vmatprep.mubr.f32.mxu0 %v387
        %621 = vmatmul.mubr.f32.gmra.mrb[0].mxu0 %v383
        %v622 = vpop.f32.mrb[0].mxu0
        %v623 = vadd.f32 0.0, %v622
        %v624 = vpop.f32.mrb[0].mxu0
        %v625 = vadd.f32 0.0, %v624
        %626 = vdwg.mxu0
        %627 = vmatprep.subr.mxu0 %v238
        %628 = vmatpush1.msra.mxu0 %v237
        %629 = vmatprep.subr.mxu0 %v246
        %630 = vmatpush1.msra.mxu0 %v245
        %631 = vmatprep.subr.mxu0 %v254
        %632 = vmatpush1.msra.mxu0 %v253
        %633 = vmatprep.subr.mxu0 %v262
        %634 = vmatpush1.msra.mxu0 %v261
        %635 = vmatprep.subr.mxu0 %v270
        %636 = vmatpush1.msra.mxu0 %v269
        %637 = vmatprep.subr.mxu0 %v278
        %638 = vmatpush1.msra.mxu0 %v277
        %639 = vmatprep.subr.mxu0 %v286
        %640 = vmatpush1.msra.mxu0 %v285
        %641 = vmatprep.subr.mxu0 %v294
        %642 = vmatpush1.msra.mxu0 %v293
        %643 = vmatprep.subr.mxu0 %v302
        %644 = vmatpush1.msra.mxu0 %v301
        %645 = vmatprep.subr.mxu0 %v310
        %646 = vmatpush1.msra.mxu0 %v309
        %647 = vmatprep.subr.mxu0 %v318
        %648 = vmatpush1.msra.mxu0 %v317
        %649 = vmatprep.subr.mxu0 %v326
        %650 = vmatpush1.msra.mxu0 %v325
        %651 = vmatprep.subr.mxu0 %v334
        %652 = vmatpush1.msra.mxu0 %v333
        %653 = vmatprep.subr.mxu0 %v342
        %654 = vmatpush1.msra.mxu0 %v341
        %655 = vmatprep.subr.mxu0 %v350
        %656 = vmatpush1.msra.mxu0 %v349
        %657 = vmatprep.subr.mxu0 %v358
        %658 = vmatpush1.msra.mxu0 %v357
        %659 = vmatprep.subr.mxu0 %v366
        %660 = vmatpush1.msra.mxu0 %v365
        %661 = vmatprep.subr.mxu0 %v374
        %662 = vmatpush1.msra.mxu0 %v373
        %663 = vmatprep.subr.mxu0 %v412
        %664 = vmatpush1.msra.mxu0 %v409
        %665 = vmatprep.subr.mxu0 0.0
        %666 = vmatpush1.msra.mxu0 0.0
        %667 = vmatprep.subr.mxu0 0.0
        %668 = vmatpush1.msra.mxu0 0.0
        %669 = vmatprep.subr.mxu0 0.0
        %670 = vmatpush1.msra.mxu0 0.0
        %671 = vmatprep.subr.mxu0 0.0
        %672 = vmatpush1.msra.mxu0 0.0
        %673 = vmatprep.subr.mxu0 0.0
        %674 = vmatpush1.msra.mxu0 0.0
        %675 = vmatprep.subr.mxu0 0.0
        %676 = vmatpush1.msra.mxu0 0.0
        %677 = vmatprep.subr.mxu0 0.0
        %678 = vmatpush1.msra.mxu0 0.0
        %679 = vmatprep.subr.mxu0 0.0
        %680 = vmatpush1.msra.mxu0 0.0
        %681 = vmatprep.subr.mxu0 0.0
        %682 = vmatpush1.msra.mxu0 0.0
        %683 = vmatprep.subr.mxu0 0.0
        %684 = vmatpush1.msra.mxu0 0.0
        %685 = vmatprep.subr.mxu0 0.0
        %686 = vmatpush1.msra.mxu0 0.0
        %687 = vmatprep.subr.mxu0 0.0
        %688 = vmatpush1.msra.mxu0 0.0
        %689 = vmatprep.subr.mxu0 0.0
        %690 = vmatpush1.msra.mxu0 0.0
        %691 = vmatprep.mubr.f32.mxu0 %v387
        %692 = vmatmul.mubr.f32.gmra.mrb[0].mxu0 %v383
        %v693 = vpop.f32.mrb[0].mxu0
        %v694 = vadd.f32 0.0, %v693
        %v695 = vpop.f32.mrb[0].mxu0
        %v696 = vadd.f32 0.0, %v695
        %697 = vdwg.mxu0
        %v698 = vld [vmem:[%s2] sm:$0xff]
        %700 = vset.pattern.permute.xlu0 0
        %701 = vperm.xlu0 %700, %v698
        %v702 = vpop.permute.xlu0 %701
        %v704 = vmul.f32 %v481, %v702
        %v705 = vmul.f32 %v483, %v702
        %v706 = vmul.f32 %v552, %v702
        %v707 = vmul.f32 %v554, %v702
        %v708 = vmul.f32 %v623, %v702
        %v709 = vmul.f32 %v625, %v702
        %v710 = vmul.f32 %v694, %v702
        %v711 = vmul.f32 %v696, %v702
        %v712 = vld [vmem:[%s3] sm:$0xff]
        %714 = vset.pattern.permute.xlu0 0
        %715 = vperm.xlu0 %714, %v712
        %v716 = vpop.permute.xlu0 %715
        %v718 = vadd.f32 %v704, %v716
        %v719 = vadd.f32 %v705, %v716
        %v720 = vadd.f32 %v706, %v716
        %v721 = vadd.f32 %v707, %v716
        %v722 = vadd.f32 %v708, %v716
        %v723 = vadd.f32 %v709, %v716
        %v724 = vadd.f32 %v710, %v716
        %v725 = vadd.f32 %v711, %v716
        %v726 = vmax.f32 %v718, 0.0
        %v727 = vmax.f32 %v719, 0.0
        %v728 = vmax.f32 %v720, 0.0
        %v729 = vmax.f32 %v721, 0.0
        %v730 = vmax.f32 %v722, 0.0
        %v731 = vmax.f32 %v723, 0.0
        %v732 = vmax.f32 %v724, 0.0
        %v733 = vmax.f32 %v725, 0.0
        %734 = vst [vmem:[%s228] sm:$0xff] %v726
        %735 = vst [vmem:[%s228 + $0x8] sm:$0xff] %v727
        %736 = vst [vmem:[%s228 + $0x10] sm:$0xff] %v728
        %737 = vst [vmem:[%s228 + $0x18] sm:$0xff] %v729
        %738 = vst [vmem:[%s228 + $0x20] sm:$0xff] %v730
        %739 = vst [vmem:[%s228 + $0x28] sm:$0xff] %v731
        %740 = vst [vmem:[%s228 + $0x30] sm:$0xff] %v732
        %741 = vst [vmem:[%s228 + $0x38] sm:$0xff] %v733
        %s742 = sand.u32 %s119, 1
        %s743 = scalar_lea.sflag [#allocation4], %s742
        %s744 = sand.u32 %s119, 1
        %s745 = smul.addr %s744, 64
        %s746 = scalar_lea.vmem [#allocation7], %s745
        // Predicated region
        $region45: #{tpu_custom_call.1} parent=35 // pred_check
          %p747 = pneg %p129
        $region46: #{tpu_custom_call.1} parent=35 // pred_check_branch
          %749 = sbr.rel (%p747) target = $region48
        $region47: #{tpu_custom_call.1} parent=35 // pred_region
          %s750 = smul.u32 8, %s22
          %s752 = ssub.s32 1024, 1024
          %753 = vsyncadd %s743, %s752
          %s754 = smul.addr %s750, 128
          %s755 = scalar_lea.hbm %s4, %s754
          %s757 = sshll.u32 %s746, 4
          %s758 = int_to_ptr.vmem [resolvable:$true] %s757
          %760 = dma.vmem_to_hbm [thread:$0]  %s758, 1024, %s755, %s743
        $region48: #{tpu_custom_call.1} parent=35 // pred_fallthru
          _
      $region36: #{tpu_custom_call.1} parent=5 // pred_fallthru
        _
      %p761 = scmp.le.s32.totalorder 2, %s17
      // Predicated region
      $region49: #{tpu_custom_call.1} parent=5 // pred_check
        %p762 = pneg %p761
      $region50: #{tpu_custom_call.1} parent=5 // pred_check_branch
        %764 = sbr.rel (%p762) target = $region52
      $region51: #{tpu_custom_call.1} parent=5 // pred_region
        %s765 = ssub.s32 %s17, 2
        // Predicated region
        $region53: #{tpu_custom_call.1} parent=51 // pred_check
          %p766 = pneg %p135
        $region54: #{tpu_custom_call.1} parent=51 // pred_check_branch
          %768 = sbr.rel (%p766) target = $region56
        $region55: #{tpu_custom_call.1} parent=51 // pred_region
          %s769 = sand.u32 %s120, 1
          %s770 = scalar_lea.sflag [#allocation4], %s769
          %s771 = sand.u32 %s120, 1
          %s772 = smul.addr %s771, 64
          %s773 = scalar_lea.vmem [#allocation7], %s772
          %774 = dma.done %s770, 1024
        $region56: #{tpu_custom_call.1} parent=51 // pred_fallthru
          _
      $region52: #{tpu_custom_call.1} parent=5 // pred_fallthru
        _
    $region6: #{tpu_custom_call.1} parent=1 // loop_footer
      %s21 = sadd.s32 1, %s17
    $region7: #{tpu_custom_call.1} parent=1 // loop_footer_branch
      %16 = sbr.rel target = $region3
    $region8: #{tpu_custom_call.1} parent=1 // loop_exit
      _
    %775 = vsyncpa [#allocation3], 1
    %s776 = scalar_lea.sflag [#allocation3], 1
    %777 = vsyncpa %s776, 1
    %778 = vsyncpa [#allocation6], 1
    %779 = vsyncpa [#allocation4], 1
    %s780 = scalar_lea.sflag [#allocation4], 1
    %781 = vsyncpa %s780, 1

</llo_original>
